<compile_context>
chip_gen: v5e
topology: v5e:2x2
jax: 0.10.0
libtpu: 0.0.40
codegen_flags: <defaults>
</compile_context>

<pallas_src>
import functools

import jax
import jax.numpy as jnp
from jax import lax
from jax.experimental import pallas as pl
from jax.experimental.pallas import tpu as pltpu


def joint_gather_kernel(idx_ref, logits_ref, lse_ref, out_ref, *, cn, unroll_cols):
    """Gather log_softmax(logits)[row, idx] for one (tn, tb) output tile."""
    tn, tb = out_ref.shape
    k2 = logits_ref.shape[-1]
    n_chunks = tn // cn

    # Inner loop over sublane chunks: every (cn, tb) intermediate fits in a
    # handful of vregs, so the k2-column accumulate never touches VMEM.
    @pl.loop(0, n_chunks)
    def _(ci):
        r0 = pl.multiple_of(ci * cn, cn)

        idx_c = idx_ref[pl.ds(r0, cn), :].astype(jnp.int32)      # (cn, tb)
        neg_lse = -lse_ref[pl.ds(r0, cn), :]                     # (cn, 1)
        # Fold the log-sum-exp subtraction into the accumulator init.
        acc = jnp.broadcast_to(neg_lse, idx_c.shape)

        if unroll_cols:
            # Small k2: statically unrolled column accumulate; each column is a
            # narrow (cn, 1) VMEM load broadcast over the batch lanes.
            for c in range(k2):
                col = logits_ref[pl.ds(r0, cn), c:c + 1]         # (cn, 1)
                acc = acc + jnp.where(idx_c == c, col, 0.0)
        else:
            # Large k2: rolled column loop (bounded code size), same vreg-resident
            # accumulate; dynamic single-column loads from the logits block.
            def body(c, acc):
                col = logits_ref[pl.ds(r0, cn), pl.ds(c, 1)]     # (cn, 1)
                return acc + jnp.where(idx_c == c, col, 0.0)

            acc = lax.fori_loop(0, k2, body, acc, unroll=8)

        out_ref[pl.ds(r0, cn), :] = acc.astype(out_ref.dtype)


def _round_up(x, m):
    return ((x + m - 1) // m) * m


def joint_forward(a, b, logits, k, *, tn=None, tb=None):
    """Pallas implementation of JointModule.forward(a, b)."""
    n, k2 = logits.shape
    assert a.shape == b.shape and a.shape[0] == n
    B = a.shape[1]

    logits = logits.astype(jnp.float32)

    # Per-row log-sum-exp, computed once in plain JAX (tiny: n x k2) and passed
    # in; the kernel folds it into the accumulator init.
    m = jnp.max(logits, axis=1, keepdims=True)
    lse = m + jnp.log(jnp.sum(jnp.exp(logits - m), axis=1, keepdims=True))   # (n, 1)

    # Packed joint index, narrowed to int16: 1/4 the HBM index traffic of two
    # int32 streams and no in-kernel mul/add.  Values are < k2 so exact.
    idx = a.astype(jnp.int32) * k + b.astype(jnp.int32)
    if k2 <= 32767:
        idx = idx.astype(jnp.int16)
    idx_bytes = idx.dtype.itemsize

    # ---- tile selection ------------------------------------------------------
    # Batch tile: always lane-dense (multiple of 128 -> unmasked vst, wide DMA),
    # capped at 512 so the per-chunk working set stays vreg-resident.
    if tb is None:
        tb = min(_round_up(B, 128), 512)
    else:
        tb = max(128, _round_up(tb, 128))
    # Row tile: sized from a VMEM budget, multiple of 32 (clean sub-32-bit
    # sublane packing for the int16 index), capped at 512.
    if tn is None:
        per_row_bytes = tb * (idx_bytes + 4) + 4 * k2 + 4   # idx + out + logits + lse
        budget = 6 * 1024 * 1024                            # live (single-buffer) bytes
        tn = max(32, min(512, budget // max(per_row_bytes, 1)))
    tn = max(32, (tn // 32) * 32)
    tn = min(tn, _round_up(n, 32))

    # Sublane chunk for the in-kernel loop: keep (cn, tb) at <= ~8 f32 vregs.
    cn = 32 if tb <= 256 else 16      # both divide tn (multiple of 32)

    # ---- pad to whole tiles (arbitrary n / batch) -----------------------------
    n_pad = pl.cdiv(n, tn) * tn
    B_pad = pl.cdiv(B, tb) * tb
    if n_pad != n or B_pad != B:
        idx = jnp.pad(idx, ((0, n_pad - n), (0, B_pad - B)))
        logits = jnp.pad(logits, ((0, n_pad - n), (0, 0)))
        lse = jnp.pad(lse, ((0, n_pad - n), (0, 0)))

    grid = (n_pad // tn, B_pad // tb)

    # Explicit scoped-VMEM limit: above v5e's 16 MiB default, comfortably below
    # v7x's 64 MiB physical VMEM (leave headroom for Mosaic internal scratch).
    block_bytes = 2 * (tn * tb * (idx_bytes + 4) + tn * (k2 + 1) * 4)
    vmem_limit = int(min(48 * 1024 * 1024,
                         max(32 * 1024 * 1024, 4 * block_bytes)))

    kernel = functools.partial(joint_gather_kernel, cn=cn,
                               unroll_cols=(k2 <= 128))

    out = pl.pallas_call(
        kernel,
        out_shape=jax.ShapeDtypeStruct((n_pad, B_pad), jnp.float32),
        grid_spec=pltpu.PrefetchScalarGridSpec(
            num_scalar_prefetch=0,
            grid=grid,
            in_specs=[
                pl.BlockSpec((tn, tb), lambda i, j: (i, j)),    # packed idx (int16)
                pl.BlockSpec((tn, k2), lambda i, j: (i, 0)),    # raw logits (reused over j)
                pl.BlockSpec((tn, 1), lambda i, j: (i, 0)),     # per-row lse
            ],
            out_specs=pl.BlockSpec((tn, tb), lambda i, j: (i, j)),
        ),
        compiler_params=pltpu.CompilerParams(
            dimension_semantics=("parallel", "parallel"),
            vmem_limit_bytes=vmem_limit,
        ),
    )(idx, logits, lse)

    if n_pad != n or B_pad != B:
        out = out[:n, :B]
    return out


def _reference(a, b, logits, k):
    n = logits.shape[0]
    batch = a.shape[1]
    logsm = jax.nn.log_softmax(logits, axis=1)
    rows = jnp.repeat(jnp.arange(n), batch)
    idx = (a * k + b).reshape(-1)
    return logsm[rows, idx].reshape(n, batch)


if __name__ == "__main__":
    key = jax.random.PRNGKey(0)

    # --- small shapes consistent with the module (n, k, batch) ---------------
    n, k, batch = 12, 4, 10
    k2 = k * k
    key_l, key_a, key_b, key = jax.random.split(key, 4)
    logits = jax.random.normal(key_l, (n, k2), dtype=jnp.float32)
    logits = logits - jnp.mean(logits, axis=1, keepdims=True)   # mimic __init__
    a = jax.random.randint(key_a, (n, batch), 0, k, dtype=jnp.int32)
    b = jax.random.randint(key_b, (n, batch), 0, k, dtype=jnp.int32)

    out = jax.block_until_ready(joint_forward(a, b, logits, k))
    ref = _reference(a, b, logits, k)
    assert out.shape == (n, batch)
    assert jnp.allclose(out, ref, atol=1e-5, rtol=1e-5)

    # --- second config: multiple row/batch tiles and multiple in-kernel chunks
    n2, kk, batch2 = 70, 5, 300
    key_l2, key_a2, key_b2 = jax.random.split(key, 3)
    logits2 = jax.random.normal(key_l2, (n2, kk * kk), dtype=jnp.float32)
    logits2 = logits2 - jnp.mean(logits2, axis=1, keepdims=True)
    a2 = jax.random.randint(key_a2, (n2, batch2), 0, kk, dtype=jnp.int32)
    b2 = jax.random.randint(key_b2, (n2, batch2), 0, kk, dtype=jnp.int32)

    out2 = jax.block_until_ready(joint_forward(a2, b2, logits2, kk, tn=32, tb=128))
    ref2 = _reference(a2, b2, logits2, kk)
    assert out2.shape == (n2, batch2)
    assert jnp.allclose(out2, ref2, atol=1e-5, rtol=1e-5)

    print("KERNEL_OK")
</pallas_src>

<mosaic_0001>
module attributes {stable_mosaic.version = 11 : i64} {
  func.func @joint_gather_kernel(%arg0: i32, %arg1: i32, %arg2: memref<32x128xi16, #tpu.memory_space<vmem>>, %arg3: memref<32x16xf32, #tpu.memory_space<vmem>>, %arg4: memref<32x1xf32, #tpu.memory_space<vmem>>, %arg5: memref<32x128xf32, #tpu.memory_space<vmem>>) attributes {dimension_semantics = [#tpu.dimension_semantics<parallel>, #tpu.dimension_semantics<parallel>], iteration_bounds = array<i64: 1, 1>, scalar_prefetch = 0 : i64, scratch_operands = 0 : i64, tpu.core_type = #tpu.core_type<tc>, window_params = [{transform_indices = @transform_0, window_bounds = array<i64: 32, 128>}, {transform_indices = @transform_1, window_bounds = array<i64: 32, 16>}, {transform_indices = @transform_2, window_bounds = array<i64: 32, 1>}, {transform_indices = @transform_3, window_bounds = array<i64: 32, 128>}]} {
    %c0_i32 = arith.constant 0 : i32
    %c1_i32 = arith.constant 1 : i32
    %0 = arith.muli %c0_i32, %c1_i32 : i32
    %c0_i32_0 = arith.constant 0 : i32
    %1 = arith.addi %c0_i32_0, %0 : i32
    %c32_i32 = arith.constant 32 : i32
    %2 = arith.muli %1, %c32_i32 : i32
    %3 = tpu.assume_multiple %2, 32 : i32
    %4 = arith.index_cast %3 : i32 to index
    %c0 = arith.constant 0 : index
    %5 = vector.load %arg2[%4, %c0] : memref<32x128xi16, #tpu.memory_space<vmem>>, vector<32x128xi16>
    %6 = arith.extsi %5 : vector<32x128xi16> to vector<32x128xi32>
    %7 = arith.index_cast %3 : i32 to index
    %c0_1 = arith.constant 0 : index
    %8 = vector.load %arg4[%7, %c0_1] : memref<32x1xf32, #tpu.memory_space<vmem>>, vector<32x1xf32>
    %cst = arith.constant 0.000000e+00 : f32
    %9 = vector.broadcast %cst : f32 to vector<32x1xf32>
    %10 = arith.subf %9, %8 : vector<32x1xf32>
    %11 = vector.shape_cast %10 : vector<32x1xf32> to vector<32x1xf32>
    %12 = vector.broadcast %11 : vector<32x1xf32> to vector<32x128xf32>
    %13 = arith.index_cast %3 : i32 to index
    %c0_2 = arith.constant 0 : index
    %14 = vector.load %arg3[%13, %c0_2] : memref<32x16xf32, #tpu.memory_space<vmem>>, vector<32x1xf32>
    %c0_i32_3 = arith.constant 0 : i32
    %15 = vector.broadcast %c0_i32_3 : i32 to vector<32x128xi32>
    %16 = arith.cmpi eq, %6, %15 : vector<32x128xi32>
    %cst_4 = arith.constant 0.000000e+00 : f32
    %17 = vector.shape_cast %14 : vector<32x1xf32> to vector<32x1xf32>
    %18 = vector.broadcast %17 : vector<32x1xf32> to vector<32x128xf32>
    %19 = vector.broadcast %cst_4 : f32 to vector<32x128xf32>
    %20 = arith.select %16, %18, %19 : vector<32x128xi1>, vector<32x128xf32>
    %21 = arith.addf %12, %20 : vector<32x128xf32>
    %22 = arith.index_cast %3 : i32 to index
    %c1 = arith.constant 1 : index
    %23 = vector.load %arg3[%22, %c1] : memref<32x16xf32, #tpu.memory_space<vmem>>, vector<32x1xf32>
    %c1_i32_5 = arith.constant 1 : i32
    %24 = vector.broadcast %c1_i32_5 : i32 to vector<32x128xi32>
    %25 = arith.cmpi eq, %6, %24 : vector<32x128xi32>
    %cst_6 = arith.constant 0.000000e+00 : f32
    %26 = vector.shape_cast %23 : vector<32x1xf32> to vector<32x1xf32>
    %27 = vector.broadcast %26 : vector<32x1xf32> to vector<32x128xf32>
    %28 = vector.broadcast %cst_6 : f32 to vector<32x128xf32>
    %29 = arith.select %25, %27, %28 : vector<32x128xi1>, vector<32x128xf32>
    %30 = arith.addf %21, %29 : vector<32x128xf32>
    %31 = arith.index_cast %3 : i32 to index
    %c2 = arith.constant 2 : index
    %32 = vector.load %arg3[%31, %c2] : memref<32x16xf32, #tpu.memory_space<vmem>>, vector<32x1xf32>
    %c2_i32 = arith.constant 2 : i32
    %33 = vector.broadcast %c2_i32 : i32 to vector<32x128xi32>
    %34 = arith.cmpi eq, %6, %33 : vector<32x128xi32>
    %cst_7 = arith.constant 0.000000e+00 : f32
    %35 = vector.shape_cast %32 : vector<32x1xf32> to vector<32x1xf32>
    %36 = vector.broadcast %35 : vector<32x1xf32> to vector<32x128xf32>
    %37 = vector.broadcast %cst_7 : f32 to vector<32x128xf32>
    %38 = arith.select %34, %36, %37 : vector<32x128xi1>, vector<32x128xf32>
    %39 = arith.addf %30, %38 : vector<32x128xf32>
    %40 = arith.index_cast %3 : i32 to index
    %c3 = arith.constant 3 : index
    %41 = vector.load %arg3[%40, %c3] : memref<32x16xf32, #tpu.memory_space<vmem>>, vector<32x1xf32>
    %c3_i32 = arith.constant 3 : i32
    %42 = vector.broadcast %c3_i32 : i32 to vector<32x128xi32>
    %43 = arith.cmpi eq, %6, %42 : vector<32x128xi32>
    %cst_8 = arith.constant 0.000000e+00 : f32
    %44 = vector.shape_cast %41 : vector<32x1xf32> to vector<32x1xf32>
    %45 = vector.broadcast %44 : vector<32x1xf32> to vector<32x128xf32>
    %46 = vector.broadcast %cst_8 : f32 to vector<32x128xf32>
    %47 = arith.select %43, %45, %46 : vector<32x128xi1>, vector<32x128xf32>
    %48 = arith.addf %39, %47 : vector<32x128xf32>
    %49 = arith.index_cast %3 : i32 to index
    %c4 = arith.constant 4 : index
    %50 = vector.load %arg3[%49, %c4] : memref<32x16xf32, #tpu.memory_space<vmem>>, vector<32x1xf32>
    %c4_i32 = arith.constant 4 : i32
    %51 = vector.broadcast %c4_i32 : i32 to vector<32x128xi32>
    %52 = arith.cmpi eq, %6, %51 : vector<32x128xi32>
    %cst_9 = arith.constant 0.000000e+00 : f32
    %53 = vector.shape_cast %50 : vector<32x1xf32> to vector<32x1xf32>
    %54 = vector.broadcast %53 : vector<32x1xf32> to vector<32x128xf32>
    %55 = vector.broadcast %cst_9 : f32 to vector<32x128xf32>
    %56 = arith.select %52, %54, %55 : vector<32x128xi1>, vector<32x128xf32>
    %57 = arith.addf %48, %56 : vector<32x128xf32>
    %58 = arith.index_cast %3 : i32 to index
    %c5 = arith.constant 5 : index
    %59 = vector.load %arg3[%58, %c5] : memref<32x16xf32, #tpu.memory_space<vmem>>, vector<32x1xf32>
    %c5_i32 = arith.constant 5 : i32
    %60 = vector.broadcast %c5_i32 : i32 to vector<32x128xi32>
    %61 = arith.cmpi eq, %6, %60 : vector<32x128xi32>
    %cst_10 = arith.constant 0.000000e+00 : f32
    %62 = vector.shape_cast %59 : vector<32x1xf32> to vector<32x1xf32>
    %63 = vector.broadcast %62 : vector<32x1xf32> to vector<32x128xf32>
    %64 = vector.broadcast %cst_10 : f32 to vector<32x128xf32>
    %65 = arith.select %61, %63, %64 : vector<32x128xi1>, vector<32x128xf32>
    %66 = arith.addf %57, %65 : vector<32x128xf32>
    %67 = arith.index_cast %3 : i32 to index
    %c6 = arith.constant 6 : index
    %68 = vector.load %arg3[%67, %c6] : memref<32x16xf32, #tpu.memory_space<vmem>>, vector<32x1xf32>
    %c6_i32 = arith.constant 6 : i32
    %69 = vector.broadcast %c6_i32 : i32 to vector<32x128xi32>
    %70 = arith.cmpi eq, %6, %69 : vector<32x128xi32>
    %cst_11 = arith.constant 0.000000e+00 : f32
    %71 = vector.shape_cast %68 : vector<32x1xf32> to vector<32x1xf32>
    %72 = vector.broadcast %71 : vector<32x1xf32> to vector<32x128xf32>
    %73 = vector.broadcast %cst_11 : f32 to vector<32x128xf32>
    %74 = arith.select %70, %72, %73 : vector<32x128xi1>, vector<32x128xf32>
    %75 = arith.addf %66, %74 : vector<32x128xf32>
    %76 = arith.index_cast %3 : i32 to index
    %c7 = arith.constant 7 : index
    %77 = vector.load %arg3[%76, %c7] : memref<32x16xf32, #tpu.memory_space<vmem>>, vector<32x1xf32>
    %c7_i32 = arith.constant 7 : i32
    %78 = vector.broadcast %c7_i32 : i32 to vector<32x128xi32>
    %79 = arith.cmpi eq, %6, %78 : vector<32x128xi32>
    %cst_12 = arith.constant 0.000000e+00 : f32
    %80 = vector.shape_cast %77 : vector<32x1xf32> to vector<32x1xf32>
    %81 = vector.broadcast %80 : vector<32x1xf32> to vector<32x128xf32>
    %82 = vector.broadcast %cst_12 : f32 to vector<32x128xf32>
    %83 = arith.select %79, %81, %82 : vector<32x128xi1>, vector<32x128xf32>
    %84 = arith.addf %75, %83 : vector<32x128xf32>
    %85 = arith.index_cast %3 : i32 to index
    %c8 = arith.constant 8 : index
    %86 = vector.load %arg3[%85, %c8] : memref<32x16xf32, #tpu.memory_space<vmem>>, vector<32x1xf32>
    %c8_i32 = arith.constant 8 : i32
    %87 = vector.broadcast %c8_i32 : i32 to vector<32x128xi32>
    %88 = arith.cmpi eq, %6, %87 : vector<32x128xi32>
    %cst_13 = arith.constant 0.000000e+00 : f32
    %89 = vector.shape_cast %86 : vector<32x1xf32> to vector<32x1xf32>
    %90 = vector.broadcast %89 : vector<32x1xf32> to vector<32x128xf32>
    %91 = vector.broadcast %cst_13 : f32 to vector<32x128xf32>
    %92 = arith.select %88, %90, %91 : vector<32x128xi1>, vector<32x128xf32>
    %93 = arith.addf %84, %92 : vector<32x128xf32>
    %94 = arith.index_cast %3 : i32 to index
    %c9 = arith.constant 9 : index
    %95 = vector.load %arg3[%94, %c9] : memref<32x16xf32, #tpu.memory_space<vmem>>, vector<32x1xf32>
    %c9_i32 = arith.constant 9 : i32
    %96 = vector.broadcast %c9_i32 : i32 to vector<32x128xi32>
    %97 = arith.cmpi eq, %6, %96 : vector<32x128xi32>
    %cst_14 = arith.constant 0.000000e+00 : f32
    %98 = vector.shape_cast %95 : vector<32x1xf32> to vector<32x1xf32>
    %99 = vector.broadcast %98 : vector<32x1xf32> to vector<32x128xf32>
    %100 = vector.broadcast %cst_14 : f32 to vector<32x128xf32>
    %101 = arith.select %97, %99, %100 : vector<32x128xi1>, vector<32x128xf32>
    %102 = arith.addf %93, %101 : vector<32x128xf32>
    %103 = arith.index_cast %3 : i32 to index
    %c10 = arith.constant 10 : index
    %104 = vector.load %arg3[%103, %c10] : memref<32x16xf32, #tpu.memory_space<vmem>>, vector<32x1xf32>
    %c10_i32 = arith.constant 10 : i32
    %105 = vector.broadcast %c10_i32 : i32 to vector<32x128xi32>
    %106 = arith.cmpi eq, %6, %105 : vector<32x128xi32>
    %cst_15 = arith.constant 0.000000e+00 : f32
    %107 = vector.shape_cast %104 : vector<32x1xf32> to vector<32x1xf32>
    %108 = vector.broadcast %107 : vector<32x1xf32> to vector<32x128xf32>
    %109 = vector.broadcast %cst_15 : f32 to vector<32x128xf32>
    %110 = arith.select %106, %108, %109 : vector<32x128xi1>, vector<32x128xf32>
    %111 = arith.addf %102, %110 : vector<32x128xf32>
    %112 = arith.index_cast %3 : i32 to index
    %c11 = arith.constant 11 : index
    %113 = vector.load %arg3[%112, %c11] : memref<32x16xf32, #tpu.memory_space<vmem>>, vector<32x1xf32>
    %c11_i32 = arith.constant 11 : i32
    %114 = vector.broadcast %c11_i32 : i32 to vector<32x128xi32>
    %115 = arith.cmpi eq, %6, %114 : vector<32x128xi32>
    %cst_16 = arith.constant 0.000000e+00 : f32
    %116 = vector.shape_cast %113 : vector<32x1xf32> to vector<32x1xf32>
    %117 = vector.broadcast %116 : vector<32x1xf32> to vector<32x128xf32>
    %118 = vector.broadcast %cst_16 : f32 to vector<32x128xf32>
    %119 = arith.select %115, %117, %118 : vector<32x128xi1>, vector<32x128xf32>
    %120 = arith.addf %111, %119 : vector<32x128xf32>
    %121 = arith.index_cast %3 : i32 to index
    %c12 = arith.constant 12 : index
    %122 = vector.load %arg3[%121, %c12] : memref<32x16xf32, #tpu.memory_space<vmem>>, vector<32x1xf32>
    %c12_i32 = arith.constant 12 : i32
    %123 = vector.broadcast %c12_i32 : i32 to vector<32x128xi32>
    %124 = arith.cmpi eq, %6, %123 : vector<32x128xi32>
    %cst_17 = arith.constant 0.000000e+00 : f32
    %125 = vector.shape_cast %122 : vector<32x1xf32> to vector<32x1xf32>
    %126 = vector.broadcast %125 : vector<32x1xf32> to vector<32x128xf32>
    %127 = vector.broadcast %cst_17 : f32 to vector<32x128xf32>
    %128 = arith.select %124, %126, %127 : vector<32x128xi1>, vector<32x128xf32>
    %129 = arith.addf %120, %128 : vector<32x128xf32>
    %130 = arith.index_cast %3 : i32 to index
    %c13 = arith.constant 13 : index
    %131 = vector.load %arg3[%130, %c13] : memref<32x16xf32, #tpu.memory_space<vmem>>, vector<32x1xf32>
    %c13_i32 = arith.constant 13 : i32
    %132 = vector.broadcast %c13_i32 : i32 to vector<32x128xi32>
    %133 = arith.cmpi eq, %6, %132 : vector<32x128xi32>
    %cst_18 = arith.constant 0.000000e+00 : f32
    %134 = vector.shape_cast %131 : vector<32x1xf32> to vector<32x1xf32>
    %135 = vector.broadcast %134 : vector<32x1xf32> to vector<32x128xf32>
    %136 = vector.broadcast %cst_18 : f32 to vector<32x128xf32>
    %137 = arith.select %133, %135, %136 : vector<32x128xi1>, vector<32x128xf32>
    %138 = arith.addf %129, %137 : vector<32x128xf32>
    %139 = arith.index_cast %3 : i32 to index
    %c14 = arith.constant 14 : index
    %140 = vector.load %arg3[%139, %c14] : memref<32x16xf32, #tpu.memory_space<vmem>>, vector<32x1xf32>
    %c14_i32 = arith.constant 14 : i32
    %141 = vector.broadcast %c14_i32 : i32 to vector<32x128xi32>
    %142 = arith.cmpi eq, %6, %141 : vector<32x128xi32>
    %cst_19 = arith.constant 0.000000e+00 : f32
    %143 = vector.shape_cast %140 : vector<32x1xf32> to vector<32x1xf32>
    %144 = vector.broadcast %143 : vector<32x1xf32> to vector<32x128xf32>
    %145 = vector.broadcast %cst_19 : f32 to vector<32x128xf32>
    %146 = arith.select %142, %144, %145 : vector<32x128xi1>, vector<32x128xf32>
    %147 = arith.addf %138, %146 : vector<32x128xf32>
    %148 = arith.index_cast %3 : i32 to index
    %c15 = arith.constant 15 : index
    %149 = vector.load %arg3[%148, %c15] : memref<32x16xf32, #tpu.memory_space<vmem>>, vector<32x1xf32>
    %c15_i32 = arith.constant 15 : i32
    %150 = vector.broadcast %c15_i32 : i32 to vector<32x128xi32>
    %151 = arith.cmpi eq, %6, %150 : vector<32x128xi32>
    %cst_20 = arith.constant 0.000000e+00 : f32
    %152 = vector.shape_cast %149 : vector<32x1xf32> to vector<32x1xf32>
    %153 = vector.broadcast %152 : vector<32x1xf32> to vector<32x128xf32>
    %154 = vector.broadcast %cst_20 : f32 to vector<32x128xf32>
    %155 = arith.select %151, %153, %154 : vector<32x128xi1>, vector<32x128xf32>
    %156 = arith.addf %147, %155 : vector<32x128xf32>
    %157 = arith.index_cast %3 : i32 to index
    %c0_21 = arith.constant 0 : index
    %158 = vector.load %arg5[%157, %c0_21] : memref<32x128xf32, #tpu.memory_space<vmem>>, vector<32x128xf32>
    tpu.vector_store %arg5[%157, %c0_21], %156 {strides = array<i32>} : memref<32x128xf32, #tpu.memory_space<vmem>>, vector<32x128xf32>,
    %c1_i32_22 = arith.constant 1 : i32
    return
  }
  func.func @transform_0(%arg0: i32, %arg1: i32) -> (i32, i32) {
    %c0_i32 = arith.constant 0 : i32
    return %arg0, %arg1 : i32, i32
  }
  func.func @transform_1(%arg0: i32, %arg1: i32) -> (i32, i32) {
    %c0_i32 = arith.constant 0 : i32
    %c0_i32_0 = arith.constant 0 : i32
    return %arg0, %c0_i32 : i32, i32
  }
  func.func @transform_2(%arg0: i32, %arg1: i32) -> (i32, i32) {
    %c0_i32 = arith.constant 0 : i32
    %c0_i32_0 = arith.constant 0 : i32
    return %arg0, %c0_i32 : i32, i32
  }
  func.func @transform_3(%arg0: i32, %arg1: i32) -> (i32, i32) {
    %c0_i32 = arith.constant 0 : i32
    return %arg0, %arg1 : i32, i32
  }
}

</mosaic_0001>

<llo_original>
// kernel: tpu_custom_call.1
$region0: #{tpu_custom_call.1}
  #allocation0 [shape = 'u32[]', space=smem, size = 0x4, offset = 0x4, fixed_abs, tag = 'smem constant byte address 0x4 - core index']
  #allocation1 [shape = 'u32[72,128]{1,0:T(1,128)}', space=vmem, size = 0x9000, scoped, tag = 'internal scratch']
  %s0 = inlined_call_operand.vmem [shape: s16[32,128], index: 0, kind: input, shape index: {}]
  %s1 = inlined_call_operand.vmem [shape: f32[32,16], index: 1, kind: input, shape index: {}]
  %s2 = inlined_call_operand.vmem [shape: f32[32,1], index: 2, kind: input, shape index: {}]
  %s3 = inlined_call_operand.hbm [shape: f32[32,128], index: 3, kind: output, shape index: {}]
  %s4 = sld [smem:[#allocation0]]
  $region22: #{tpu_custom_call.1} parent=0
    _
  %s6 = ssub.s32 1, %s4
  %s7 = scalar_select 0, %s6, %s4
  $region1: #{tpu_custom_call.1} parent=0
    #allocation2 [shape = 'u8[16384]{0}', space=vmem, size = 0x4000, scoped, tag = 'output window, operand 0, single buffered']
    #allocation3 [shape = 's32[1]{0}', space=sflag, size = 0x4, scoped, tag = 'scoped memory for tpu_custom_call.1']
    %8 = vsyncpa [#allocation3], 0
    // Predicated region
    $region2: #{tpu_custom_call.1} parent=1 // pred_check
      _
    $region3: #{tpu_custom_call.1} parent=1 // pred_check_branch
      %10 = sbr.rel (0) target = $region5
    $region4: #{tpu_custom_call.1} parent=1 // pred_region
      _
    $region5: #{tpu_custom_call.1} parent=1 // pred_fallthru
      _
    // Predicated region
    $region6: #{tpu_custom_call.1} parent=1 // pred_check
      _
    $region7: #{tpu_custom_call.1} parent=1 // pred_check_branch
      %12 = sbr.rel (0) target = $region9
    $region8: #{tpu_custom_call.1} parent=1 // pred_region
      _
    $region9: #{tpu_custom_call.1} parent=1 // pred_fallthru
      _
    // Predicated region
    $region10: #{tpu_custom_call.1} parent=1 // pred_check
      _
    $region11: #{tpu_custom_call.1} parent=1 // pred_check_branch
      %14 = sbr.rel (0) target = $region13
    $region12: #{tpu_custom_call.1} parent=1 // pred_region
      _
    $region13: #{tpu_custom_call.1} parent=1 // pred_fallthru
      _
    %v15 = vld [vmem:[%s0] sm:$0xf]
    %v16 = vld [vmem:[%s0 + $0x4] sm:$0xf]
    %v17 = vld [vmem:[%s0 + $0x8] sm:$0xf]
    %v18 = vld [vmem:[%s0 + $0xc] sm:$0xf]
    %v19 = vunpack.c.l.b16 %v15
    %v20 = vunpack.c.l.b16 %v16
    %v21 = vunpack.c.l.b16 %v17
    %v22 = vunpack.c.l.b16 %v18
    %v23 = vld [vmem:[%s2] sm:$0xff]
    %v24 = vld [vmem:[%s2 + $0x8] sm:$0xff]
    %v25 = vld [vmem:[%s2 + $0x10] sm:$0xff]
    %v26 = vld [vmem:[%s2 + $0x18] sm:$0xff]
    %v27 = vsub.f32 0.0, %v23
    %v28 = vsub.f32 0.0, %v24
    %v29 = vsub.f32 0.0, %v25
    %v30 = vsub.f32 0.0, %v26
    %32 = vset.pattern.permute.xlu0 0
    %33 = vperm.xlu0 %32, %v27
    %v34 = vpop.permute.xlu0 %33
    %37 = vset.pattern.permute.xlu0 0
    %38 = vperm.xlu0 %37, %v28
    %v39 = vpop.permute.xlu0 %38
    %42 = vset.pattern.permute.xlu0 0
    %43 = vperm.xlu0 %42, %v29
    %v44 = vpop.permute.xlu0 %43
    %47 = vset.pattern.permute.xlu0 0
    %48 = vperm.xlu0 %47, %v30
    %v49 = vpop.permute.xlu0 %48
    %v51 = vld [vmem:[%s1] sm:$0xff]
    %v52 = vld [vmem:[%s1 + $0x8] sm:$0xff]
    %v53 = vld [vmem:[%s1 + $0x10] sm:$0xff]
    %v54 = vld [vmem:[%s1 + $0x18] sm:$0xff]
    %vm55 = vcmp.eq.s32.totalorder %v19, 0
    %vm56 = vcmp.eq.s32.totalorder %v20, 0
    %vm57 = vcmp.eq.s32.totalorder %v21, 0
    %vm58 = vcmp.eq.s32.totalorder %v22, 0
    %60 = vset.pattern.permute.xlu0 0
    %61 = vperm.xlu0 %60, %v51
    %v62 = vpop.permute.xlu0 %61
    %65 = vset.pattern.permute.xlu0 0
    %66 = vperm.xlu0 %65, %v52
    %v67 = vpop.permute.xlu0 %66
    %70 = vset.pattern.permute.xlu0 0
    %71 = vperm.xlu0 %70, %v53
    %v72 = vpop.permute.xlu0 %71
    %75 = vset.pattern.permute.xlu0 0
    %76 = vperm.xlu0 %75, %v54
    %v77 = vpop.permute.xlu0 %76
    %v79 = vsel %vm55, %v62, 0.0
    %v80 = vsel %vm56, %v67, 0.0
    %v81 = vsel %vm57, %v72, 0.0
    %v82 = vsel %vm58, %v77, 0.0
    %v83 = vadd.f32 %v34, %v79
    %v84 = vadd.f32 %v39, %v80
    %v85 = vadd.f32 %v44, %v81
    %v86 = vadd.f32 %v49, %v82
    %vm87 = vcmp.eq.s32.totalorder %v19, 1
    %vm88 = vcmp.eq.s32.totalorder %v20, 1
    %vm89 = vcmp.eq.s32.totalorder %v21, 1
    %vm90 = vcmp.eq.s32.totalorder %v22, 1
    %91 = vset.pattern.permute.xlu0 1
    %92 = vperm.xlu0 %91, %v51
    %v93 = vpop.permute.xlu0 %92
    %95 = vset.pattern.permute.xlu0 1
    %96 = vperm.xlu0 %95, %v52
    %v97 = vpop.permute.xlu0 %96
    %99 = vset.pattern.permute.xlu0 1
    %100 = vperm.xlu0 %99, %v53
    %v101 = vpop.permute.xlu0 %100
    %103 = vset.pattern.permute.xlu0 1
    %104 = vperm.xlu0 %103, %v54
    %v105 = vpop.permute.xlu0 %104
    %v107 = vsel %vm87, %v93, 0.0
    %v108 = vsel %vm88, %v97, 0.0
    %v109 = vsel %vm89, %v101, 0.0
    %v110 = vsel %vm90, %v105, 0.0
    %v111 = vadd.f32 %v83, %v107
    %v112 = vadd.f32 %v84, %v108
    %v113 = vadd.f32 %v85, %v109
    %v114 = vadd.f32 %v86, %v110
    %vm115 = vcmp.eq.s32.totalorder %v19, 2
    %vm116 = vcmp.eq.s32.totalorder %v20, 2
    %vm117 = vcmp.eq.s32.totalorder %v21, 2
    %vm118 = vcmp.eq.s32.totalorder %v22, 2
    %119 = vset.pattern.permute.xlu0 2
    %120 = vperm.xlu0 %119, %v51
    %v121 = vpop.permute.xlu0 %120
    %123 = vset.pattern.permute.xlu0 2
    %124 = vperm.xlu0 %123, %v52
    %v125 = vpop.permute.xlu0 %124
    %127 = vset.pattern.permute.xlu0 2
    %128 = vperm.xlu0 %127, %v53
    %v129 = vpop.permute.xlu0 %128
    %131 = vset.pattern.permute.xlu0 2
    %132 = vperm.xlu0 %131, %v54
    %v133 = vpop.permute.xlu0 %132
    %v135 = vsel %vm115, %v121, 0.0
    %v136 = vsel %vm116, %v125, 0.0
    %v137 = vsel %vm117, %v129, 0.0
    %v138 = vsel %vm118, %v133, 0.0
    %v139 = vadd.f32 %v111, %v135
    %v140 = vadd.f32 %v112, %v136
    %v141 = vadd.f32 %v113, %v137
    %v142 = vadd.f32 %v114, %v138
    %vm143 = vcmp.eq.s32.totalorder %v19, 3
    %vm144 = vcmp.eq.s32.totalorder %v20, 3
    %vm145 = vcmp.eq.s32.totalorder %v21, 3
    %vm146 = vcmp.eq.s32.totalorder %v22, 3
    %147 = vset.pattern.permute.xlu0 3
    %148 = vperm.xlu0 %147, %v51
    %v149 = vpop.permute.xlu0 %148
    %151 = vset.pattern.permute.xlu0 3
    %152 = vperm.xlu0 %151, %v52
    %v153 = vpop.permute.xlu0 %152
    %155 = vset.pattern.permute.xlu0 3
    %156 = vperm.xlu0 %155, %v53
    %v157 = vpop.permute.xlu0 %156
    %159 = vset.pattern.permute.xlu0 3
    %160 = vperm.xlu0 %159, %v54
    %v161 = vpop.permute.xlu0 %160
    %v163 = vsel %vm143, %v149, 0.0
    %v164 = vsel %vm144, %v153, 0.0
    %v165 = vsel %vm145, %v157, 0.0
    %v166 = vsel %vm146, %v161, 0.0
    %v167 = vadd.f32 %v139, %v163
    %v168 = vadd.f32 %v140, %v164
    %v169 = vadd.f32 %v141, %v165
    %v170 = vadd.f32 %v142, %v166
    %vm171 = vcmp.eq.s32.totalorder %v19, 4
    %vm172 = vcmp.eq.s32.totalorder %v20, 4
    %vm173 = vcmp.eq.s32.totalorder %v21, 4
    %vm174 = vcmp.eq.s32.totalorder %v22, 4
    %175 = vset.pattern.permute.xlu0 4
    %176 = vperm.xlu0 %175, %v51
    %v177 = vpop.permute.xlu0 %176
    %179 = vset.pattern.permute.xlu0 4
    %180 = vperm.xlu0 %179, %v52
    %v181 = vpop.permute.xlu0 %180
    %183 = vset.pattern.permute.xlu0 4
    %184 = vperm.xlu0 %183, %v53
    %v185 = vpop.permute.xlu0 %184
    %187 = vset.pattern.permute.xlu0 4
    %188 = vperm.xlu0 %187, %v54
    %v189 = vpop.permute.xlu0 %188
    %v191 = vsel %vm171, %v177, 0.0
    %v192 = vsel %vm172, %v181, 0.0
    %v193 = vsel %vm173, %v185, 0.0
    %v194 = vsel %vm174, %v189, 0.0
    %v195 = vadd.f32 %v167, %v191
    %v196 = vadd.f32 %v168, %v192
    %v197 = vadd.f32 %v169, %v193
    %v198 = vadd.f32 %v170, %v194
    %vm199 = vcmp.eq.s32.totalorder %v19, 5
    %vm200 = vcmp.eq.s32.totalorder %v20, 5
    %vm201 = vcmp.eq.s32.totalorder %v21, 5
    %vm202 = vcmp.eq.s32.totalorder %v22, 5
    %203 = vset.pattern.permute.xlu0 5
    %204 = vperm.xlu0 %203, %v51
    %v205 = vpop.permute.xlu0 %204
    %207 = vset.pattern.permute.xlu0 5
    %208 = vperm.xlu0 %207, %v52
    %v209 = vpop.permute.xlu0 %208
    %211 = vset.pattern.permute.xlu0 5
    %212 = vperm.xlu0 %211, %v53
    %v213 = vpop.permute.xlu0 %212
    %215 = vset.pattern.permute.xlu0 5
    %216 = vperm.xlu0 %215, %v54
    %v217 = vpop.permute.xlu0 %216
    %v219 = vsel %vm199, %v205, 0.0
    %v220 = vsel %vm200, %v209, 0.0
    %v221 = vsel %vm201, %v213, 0.0
    %v222 = vsel %vm202, %v217, 0.0
    %v223 = vadd.f32 %v195, %v219
    %v224 = vadd.f32 %v196, %v220
    %v225 = vadd.f32 %v197, %v221
    %v226 = vadd.f32 %v198, %v222
    %vm227 = vcmp.eq.s32.totalorder %v19, 6
    %vm228 = vcmp.eq.s32.totalorder %v20, 6
    %vm229 = vcmp.eq.s32.totalorder %v21, 6
    %vm230 = vcmp.eq.s32.totalorder %v22, 6
    %231 = vset.pattern.permute.xlu0 6
    %232 = vperm.xlu0 %231, %v51
    %v233 = vpop.permute.xlu0 %232
    %235 = vset.pattern.permute.xlu0 6
    %236 = vperm.xlu0 %235, %v52
    %v237 = vpop.permute.xlu0 %236
    %239 = vset.pattern.permute.xlu0 6
    %240 = vperm.xlu0 %239, %v53
    %v241 = vpop.permute.xlu0 %240
    %243 = vset.pattern.permute.xlu0 6
    %244 = vperm.xlu0 %243, %v54
    %v245 = vpop.permute.xlu0 %244
    %v247 = vsel %vm227, %v233, 0.0
    %v248 = vsel %vm228, %v237, 0.0
    %v249 = vsel %vm229, %v241, 0.0
    %v250 = vsel %vm230, %v245, 0.0
    %v251 = vadd.f32 %v223, %v247
    %v252 = vadd.f32 %v224, %v248
    %v253 = vadd.f32 %v225, %v249
    %v254 = vadd.f32 %v226, %v250
    %vm255 = vcmp.eq.s32.totalorder %v19, 7
    %vm256 = vcmp.eq.s32.totalorder %v20, 7
    %vm257 = vcmp.eq.s32.totalorder %v21, 7
    %vm258 = vcmp.eq.s32.totalorder %v22, 7
    %259 = vset.pattern.permute.xlu0 7
    %260 = vperm.xlu0 %259, %v51
    %v261 = vpop.permute.xlu0 %260
    %263 = vset.pattern.permute.xlu0 7
    %264 = vperm.xlu0 %263, %v52
    %v265 = vpop.permute.xlu0 %264
    %267 = vset.pattern.permute.xlu0 7
    %268 = vperm.xlu0 %267, %v53
    %v269 = vpop.permute.xlu0 %268
    %271 = vset.pattern.permute.xlu0 7
    %272 = vperm.xlu0 %271, %v54
    %v273 = vpop.permute.xlu0 %272
    %v275 = vsel %vm255, %v261, 0.0
    %v276 = vsel %vm256, %v265, 0.0
    %v277 = vsel %vm257, %v269, 0.0
    %v278 = vsel %vm258, %v273, 0.0
    %v279 = vadd.f32 %v251, %v275
    %v280 = vadd.f32 %v252, %v276
    %v281 = vadd.f32 %v253, %v277
    %v282 = vadd.f32 %v254, %v278
    %vm283 = vcmp.eq.s32.totalorder %v19, 8
    %vm284 = vcmp.eq.s32.totalorder %v20, 8
    %vm285 = vcmp.eq.s32.totalorder %v21, 8
    %vm286 = vcmp.eq.s32.totalorder %v22, 8
    %287 = vset.pattern.permute.xlu0 8
    %288 = vperm.xlu0 %287, %v51
    %v289 = vpop.permute.xlu0 %288
    %291 = vset.pattern.permute.xlu0 8
    %292 = vperm.xlu0 %291, %v52
    %v293 = vpop.permute.xlu0 %292
    %295 = vset.pattern.permute.xlu0 8
    %296 = vperm.xlu0 %295, %v53
    %v297 = vpop.permute.xlu0 %296
    %299 = vset.pattern.permute.xlu0 8
    %300 = vperm.xlu0 %299, %v54
    %v301 = vpop.permute.xlu0 %300
    %v303 = vsel %vm283, %v289, 0.0
    %v304 = vsel %vm284, %v293, 0.0
    %v305 = vsel %vm285, %v297, 0.0
    %v306 = vsel %vm286, %v301, 0.0
    %v307 = vadd.f32 %v279, %v303
    %v308 = vadd.f32 %v280, %v304
    %v309 = vadd.f32 %v281, %v305
    %v310 = vadd.f32 %v282, %v306
    %vm311 = vcmp.eq.s32.totalorder %v19, 9
    %vm312 = vcmp.eq.s32.totalorder %v20, 9
    %vm313 = vcmp.eq.s32.totalorder %v21, 9
    %vm314 = vcmp.eq.s32.totalorder %v22, 9
    %315 = vset.pattern.permute.xlu0 9
    %316 = vperm.xlu0 %315, %v51
    %v317 = vpop.permute.xlu0 %316
    %319 = vset.pattern.permute.xlu0 9
    %320 = vperm.xlu0 %319, %v52
    %v321 = vpop.permute.xlu0 %320
    %323 = vset.pattern.permute.xlu0 9
    %324 = vperm.xlu0 %323, %v53
    %v325 = vpop.permute.xlu0 %324
    %327 = vset.pattern.permute.xlu0 9
    %328 = vperm.xlu0 %327, %v54
    %v329 = vpop.permute.xlu0 %328
    %v331 = vsel %vm311, %v317, 0.0
    %v332 = vsel %vm312, %v321, 0.0
    %v333 = vsel %vm313, %v325, 0.0
    %v334 = vsel %vm314, %v329, 0.0
    %v335 = vadd.f32 %v307, %v331
    %v336 = vadd.f32 %v308, %v332
    %v337 = vadd.f32 %v309, %v333
    %v338 = vadd.f32 %v310, %v334
    %vm339 = vcmp.eq.s32.totalorder %v19, 10
    %vm340 = vcmp.eq.s32.totalorder %v20, 10
    %vm341 = vcmp.eq.s32.totalorder %v21, 10
    %vm342 = vcmp.eq.s32.totalorder %v22, 10
    %343 = vset.pattern.permute.xlu0 10
    %344 = vperm.xlu0 %343, %v51
    %v345 = vpop.permute.xlu0 %344
    %347 = vset.pattern.permute.xlu0 10
    %348 = vperm.xlu0 %347, %v52
    %v349 = vpop.permute.xlu0 %348
    %351 = vset.pattern.permute.xlu0 10
    %352 = vperm.xlu0 %351, %v53
    %v353 = vpop.permute.xlu0 %352
    %355 = vset.pattern.permute.xlu0 10
    %356 = vperm.xlu0 %355, %v54
    %v357 = vpop.permute.xlu0 %356
    %v359 = vsel %vm339, %v345, 0.0
    %v360 = vsel %vm340, %v349, 0.0
    %v361 = vsel %vm341, %v353, 0.0
    %v362 = vsel %vm342, %v357, 0.0
    %v363 = vadd.f32 %v335, %v359
    %v364 = vadd.f32 %v336, %v360
    %v365 = vadd.f32 %v337, %v361
    %v366 = vadd.f32 %v338, %v362
    %vm367 = vcmp.eq.s32.totalorder %v19, 11
    %vm368 = vcmp.eq.s32.totalorder %v20, 11
    %vm369 = vcmp.eq.s32.totalorder %v21, 11
    %vm370 = vcmp.eq.s32.totalorder %v22, 11
    %371 = vset.pattern.permute.xlu0 11
    %372 = vperm.xlu0 %371, %v51
    %v373 = vpop.permute.xlu0 %372
    %375 = vset.pattern.permute.xlu0 11
    %376 = vperm.xlu0 %375, %v52
    %v377 = vpop.permute.xlu0 %376
    %379 = vset.pattern.permute.xlu0 11
    %380 = vperm.xlu0 %379, %v53
    %v381 = vpop.permute.xlu0 %380
    %383 = vset.pattern.permute.xlu0 11
    %384 = vperm.xlu0 %383, %v54
    %v385 = vpop.permute.xlu0 %384
    %v387 = vsel %vm367, %v373, 0.0
    %v388 = vsel %vm368, %v377, 0.0
    %v389 = vsel %vm369, %v381, 0.0
    %v390 = vsel %vm370, %v385, 0.0
    %v391 = vadd.f32 %v363, %v387
    %v392 = vadd.f32 %v364, %v388
    %v393 = vadd.f32 %v365, %v389
    %v394 = vadd.f32 %v366, %v390
    %vm395 = vcmp.eq.s32.totalorder %v19, 12
    %vm396 = vcmp.eq.s32.totalorder %v20, 12
    %vm397 = vcmp.eq.s32.totalorder %v21, 12
    %vm398 = vcmp.eq.s32.totalorder %v22, 12
    %399 = vset.pattern.permute.xlu0 12
    %400 = vperm.xlu0 %399, %v51
    %v401 = vpop.permute.xlu0 %400
    %403 = vset.pattern.permute.xlu0 12
    %404 = vperm.xlu0 %403, %v52
    %v405 = vpop.permute.xlu0 %404
    %407 = vset.pattern.permute.xlu0 12
    %408 = vperm.xlu0 %407, %v53
    %v409 = vpop.permute.xlu0 %408
    %411 = vset.pattern.permute.xlu0 12
    %412 = vperm.xlu0 %411, %v54
    %v413 = vpop.permute.xlu0 %412
    %v415 = vsel %vm395, %v401, 0.0
    %v416 = vsel %vm396, %v405, 0.0
    %v417 = vsel %vm397, %v409, 0.0
    %v418 = vsel %vm398, %v413, 0.0
    %v419 = vadd.f32 %v391, %v415
    %v420 = vadd.f32 %v392, %v416
    %v421 = vadd.f32 %v393, %v417
    %v422 = vadd.f32 %v394, %v418
    %vm423 = vcmp.eq.s32.totalorder %v19, 13
    %vm424 = vcmp.eq.s32.totalorder %v20, 13
    %vm425 = vcmp.eq.s32.totalorder %v21, 13
    %vm426 = vcmp.eq.s32.totalorder %v22, 13
    %427 = vset.pattern.permute.xlu0 13
    %428 = vperm.xlu0 %427, %v51
    %v429 = vpop.permute.xlu0 %428
    %431 = vset.pattern.permute.xlu0 13
    %432 = vperm.xlu0 %431, %v52
    %v433 = vpop.permute.xlu0 %432
    %435 = vset.pattern.permute.xlu0 13
    %436 = vperm.xlu0 %435, %v53
    %v437 = vpop.permute.xlu0 %436
    %439 = vset.pattern.permute.xlu0 13
    %440 = vperm.xlu0 %439, %v54
    %v441 = vpop.permute.xlu0 %440
    %v443 = vsel %vm423, %v429, 0.0
    %v444 = vsel %vm424, %v433, 0.0
    %v445 = vsel %vm425, %v437, 0.0
    %v446 = vsel %vm426, %v441, 0.0
    %v447 = vadd.f32 %v419, %v443
    %v448 = vadd.f32 %v420, %v444
    %v449 = vadd.f32 %v421, %v445
    %v450 = vadd.f32 %v422, %v446
    %vm451 = vcmp.eq.s32.totalorder %v19, 14
    %vm452 = vcmp.eq.s32.totalorder %v20, 14
    %vm453 = vcmp.eq.s32.totalorder %v21, 14
    %vm454 = vcmp.eq.s32.totalorder %v22, 14
    %455 = vset.pattern.permute.xlu0 14
    %456 = vperm.xlu0 %455, %v51
    %v457 = vpop.permute.xlu0 %456
    %459 = vset.pattern.permute.xlu0 14
    %460 = vperm.xlu0 %459, %v52
    %v461 = vpop.permute.xlu0 %460
    %463 = vset.pattern.permute.xlu0 14
    %464 = vperm.xlu0 %463, %v53
    %v465 = vpop.permute.xlu0 %464
    %467 = vset.pattern.permute.xlu0 14
    %468 = vperm.xlu0 %467, %v54
    %v469 = vpop.permute.xlu0 %468
    %v471 = vsel %vm451, %v457, 0.0
    %v472 = vsel %vm452, %v461, 0.0
    %v473 = vsel %vm453, %v465, 0.0
    %v474 = vsel %vm454, %v469, 0.0
    %v475 = vadd.f32 %v447, %v471
    %v476 = vadd.f32 %v448, %v472
    %v477 = vadd.f32 %v449, %v473
    %v478 = vadd.f32 %v450, %v474
    %vm479 = vcmp.eq.s32.totalorder %v19, 15
    %vm480 = vcmp.eq.s32.totalorder %v20, 15
    %vm481 = vcmp.eq.s32.totalorder %v21, 15
    %vm482 = vcmp.eq.s32.totalorder %v22, 15
    %483 = vset.pattern.permute.xlu0 15
    %484 = vperm.xlu0 %483, %v51
    %v485 = vpop.permute.xlu0 %484
    %487 = vset.pattern.permute.xlu0 15
    %488 = vperm.xlu0 %487, %v52
    %v489 = vpop.permute.xlu0 %488
    %491 = vset.pattern.permute.xlu0 15
    %492 = vperm.xlu0 %491, %v53
    %v493 = vpop.permute.xlu0 %492
    %495 = vset.pattern.permute.xlu0 15
    %496 = vperm.xlu0 %495, %v54
    %v497 = vpop.permute.xlu0 %496
    %v499 = vsel %vm479, %v485, 0.0
    %v500 = vsel %vm480, %v489, 0.0
    %v501 = vsel %vm481, %v493, 0.0
    %v502 = vsel %vm482, %v497, 0.0
    %v503 = vadd.f32 %v475, %v499
    %v504 = vadd.f32 %v476, %v500
    %v505 = vadd.f32 %v477, %v501
    %v506 = vadd.f32 %v478, %v502
    %507 = vst [vmem:[#allocation2] sm:$0xff] %v503
    %508 = vst [vmem:[#allocation2 + $0x8] sm:$0xff] %v504
    %509 = vst [vmem:[#allocation2 + $0x10] sm:$0xff] %v505
    %510 = vst [vmem:[#allocation2 + $0x18] sm:$0xff] %v506
    // Predicated region
    $region14: #{tpu_custom_call.1} parent=1 // pred_check
      _
    $region15: #{tpu_custom_call.1} parent=1 // pred_check_branch
      %512 = sbr.rel (0) target = $region17
    $region16: #{tpu_custom_call.1} parent=1 // pred_region
      %514 = vsyncadd [#allocation3], 0
      %s515 = sshll.u32 [#allocation2], 4
      %s516 = int_to_ptr.vmem [resolvable:$true] %s515
      %s517 = sshll.u32 %s3, 4
      %s518 = int_to_ptr.hbm [resolvable:$true] %s517
      %523 = dma.vmem_to_hbm [thread:$0]  %s516, 512, %s518, [#allocation3], 128, 128, 8
    $region17: #{tpu_custom_call.1} parent=1 // pred_fallthru
      _
    // Predicated region
    $region18: #{tpu_custom_call.1} parent=1 // pred_check
      _
    $region19: #{tpu_custom_call.1} parent=1 // pred_check_branch
      %525 = sbr.rel (0) target = $region21
    $region20: #{tpu_custom_call.1} parent=1 // pred_region
      %527 = dma.done [#allocation3], 512
    $region21: #{tpu_custom_call.1} parent=1 // pred_fallthru
      _
    %528 = vsyncpa [#allocation3], 1

</llo_original>
